<compile_context>
chip_gen: v7x
topology: tpu7x:2x2x1
jax: 0.10.0
libtpu: 0.0.40
codegen_flags: <defaults>
</compile_context>

<pallas_src>
import jax
import jax.numpy as jnp
from jax.experimental import pallas as pl
from jax.experimental.pallas import tpu as pltpu


def _round_up(x, m):
    return ((x + m - 1) // m) * m


def _graphconv_fused_kernel(adj_ref, x_ref, w_ref, out_ref, acc_ref):
    # adj_ref : (tm, tk)          bf16/f32 row x column panel of adjacency
    # x_ref   : (tk, d_in_p)      matching rows of the feature matrix
    # w_ref   : (d_in_p, d_out_p) full (padded) weight, resident
    # out_ref : (tm, d_out_p)
    # acc_ref : (tm, d_in_p) f32  accumulator for adj @ feature
    k = pl.program_id(1)

    @pl.when(k == 0)
    def _():
        acc_ref[...] = jnp.zeros_like(acc_ref)

    acc_ref[...] += jnp.dot(adj_ref[...], x_ref[...],
                            preferred_element_type=jnp.float32)

    @pl.when(k == pl.num_programs(1) - 1)
    def _():
        y = jnp.dot(acc_ref[...], w_ref[...],
                    preferred_element_type=jnp.float32)
        out_ref[...] = y.astype(out_ref.dtype)


def _graphconv_prereduced_kernel(adj_ref, x_ref, out_ref, acc_ref):
    # x is already feature @ weight (done once in the wrapper), so the kernel
    # is a plain K-tiled matmul adj @ x.
    # adj_ref : (tm, tk), x_ref : (tk, d_out_p), out_ref : (tm, d_out_p)
    k = pl.program_id(1)

    @pl.when(k == 0)
    def _():
        acc_ref[...] = jnp.zeros_like(acc_ref)

    acc_ref[...] += jnp.dot(adj_ref[...], x_ref[...],
                            preferred_element_type=jnp.float32)

    @pl.when(k == pl.num_programs(1) - 1)
    def _():
        out_ref[...] = acc_ref[...].astype(out_ref.dtype)


def graph_conv(feature, adj, weight, *, tm=256, tk=512,
               compute_dtype=jnp.bfloat16,
               vmem_limit_bytes=64 * 1024 * 1024):
    """Computes (adj @ feature) @ weight, same math as the PyTorch module."""
    N, d_in = feature.shape
    d_out = weight.shape[1]
    assert adj.shape == (N, N)
    out_dtype = feature.dtype

    # sublane multiple: 8 for f32 tiles, 16 for bf16 tiles
    sub = 8 * (4 // jnp.dtype(compute_dtype).itemsize)

    # Contraction-order selection: put the smaller of d_in/d_out on the inner
    # width of the dominant O(N^2) matmul.
    if d_out < d_in:
        x = jnp.dot(feature.astype(jnp.float32), weight.astype(jnp.float32),
                    precision=jax.lax.Precision.HIGHEST)     # (N, d_out), tiny
        apply_weight = False
        d_mid = d_out
    else:
        x = feature
        apply_weight = True
        d_mid = d_in

    # Adapt tile sizes to the (padded) problem: tiny problems collapse to a
    # single grid step; big problems get MXU-sized row tiles and K panels.
    tm = min(tm, _round_up(N, sub))
    tk = min(tk, _round_up(N, 128))

    n_rows = _round_up(N, tm)
    n_cols = _round_up(N, tk)
    d_mid_p = _round_up(d_mid, 128)     # lane-dense intermediate
    d_out_p = _round_up(d_out, 128)     # lane-dense output (no masked stores)

    # Zero-pad to tile-aligned, lane-dense shapes (zeros contribute nothing;
    # padded rows/cols are sliced off at the end).
    adj_p = jnp.pad(adj.astype(compute_dtype),
                    ((0, n_rows - N), (0, n_cols - N)))
    x_p = jnp.pad(x.astype(compute_dtype),
                  ((0, n_cols - N), (0, d_mid_p - d_mid)))

    grid = (n_rows // tm, n_cols // tk)

    in_specs = [
        pl.BlockSpec((tm, tk), lambda i, k: (i, k)),        # adj panel
        pl.BlockSpec((tk, d_mid_p), lambda i, k: (k, 0)),   # matching x rows
    ]
    operands = [adj_p, x_p]

    if apply_weight:
        w_p = jnp.pad(weight.astype(jnp.float32),
                      ((0, d_mid_p - d_mid), (0, d_out_p - d_out)))
        in_specs.append(pl.BlockSpec((d_mid_p, d_out_p), lambda i, k: (0, 0)))
        operands.append(w_p)
        kernel = _graphconv_fused_kernel
    else:
        kernel = _graphconv_prereduced_kernel

    out_p = pl.pallas_call(
        kernel,
        out_shape=jax.ShapeDtypeStruct((n_rows, d_out_p), out_dtype),
        grid_spec=pltpu.PrefetchScalarGridSpec(
            num_scalar_prefetch=0,
            grid=grid,
            in_specs=in_specs,
            out_specs=pl.BlockSpec((tm, d_out_p), lambda i, k: (i, 0)),
            scratch_shapes=[pltpu.VMEM((tm, d_mid_p), jnp.float32)],
        ),
        compiler_params=pltpu.CompilerParams(
            dimension_semantics=("parallel", "arbitrary"),
            vmem_limit_bytes=vmem_limit_bytes),
    )(*operands)

    return out_p[:N, :d_out]


def _check(out, ref, tol):
    err = jnp.max(jnp.abs(out - ref)) / (jnp.max(jnp.abs(ref)) + 1e-6)
    assert float(err) < tol, f"relative error {float(err)} >= {tol}"


if __name__ == "__main__":
    key = jax.random.PRNGKey(0)

    # --- Test 1: d_out >= d_in (fused path), bf16 inputs + f32 accumulation.
    N, d_in, d_out = 16, 32, 64
    k1, k2, k3, key = jax.random.split(key, 4)
    feature = jax.random.normal(k1, (N, d_in), dtype=jnp.float32)
    adj = jax.random.normal(k2, (N, N), dtype=jnp.float32)
    weight = jax.random.normal(k3, (d_in, d_out), dtype=jnp.float32)

    out = graph_conv(feature, adj, weight)  # default compute_dtype=bf16
    jax.block_until_ready(out)
    ref = jnp.matmul(jnp.matmul(adj, feature,
                                precision=jax.lax.Precision.HIGHEST),
                     weight, precision=jax.lax.Precision.HIGHEST)
    assert out.shape == (N, d_out)
    _check(out, ref, 2e-2)   # bf16-input tolerance

    # --- Test 2: d_out < d_in (pre-reduced path), ragged N, f32 compute.
    N2, d_in2, d_out2 = 24, 64, 32
    k4, k5, k6, key = jax.random.split(key, 4)
    feature2 = jax.random.normal(k4, (N2, d_in2), dtype=jnp.float32)
    adj2 = jax.random.normal(k5, (N2, N2), dtype=jnp.float32)
    weight2 = jax.random.normal(k6, (d_in2, d_out2), dtype=jnp.float32)

    out2 = graph_conv(feature2, adj2, weight2, compute_dtype=jnp.float32)
    jax.block_until_ready(out2)
    ref2 = jnp.matmul(jnp.matmul(adj2, feature2,
                                 precision=jax.lax.Precision.HIGHEST),
                      weight2, precision=jax.lax.Precision.HIGHEST)
    assert out2.shape == (N2, d_out2)
    _check(out2, ref2, 2e-2)

    print("KERNEL_OK")
</pallas_src>

<mosaic_0001>
module attributes {stable_mosaic.version = 11 : i64} {
  func.func @_graphconv_fused_kernel(%arg0: i32, %arg1: i32, %arg2: memref<16x128xbf16, #tpu.memory_space<vmem>>, %arg3: memref<128x128xbf16, #tpu.memory_space<vmem>>, %arg4: memref<128x128xf32, #tpu.memory_space<vmem>>, %arg5: memref<16x128xf32, #tpu.memory_space<vmem>>, %arg6: memref<16x128xf32, #tpu.memory_space<vmem>>) attributes {dimension_semantics = [#tpu.dimension_semantics<parallel>, #tpu.dimension_semantics<arbitrary>], iteration_bounds = array<i64: 1, 1>, scalar_prefetch = 0 : i64, scratch_operands = 1 : i64, tpu.core_type = #tpu.core_type<tc>, window_params = [{transform_indices = @transform_0, window_bounds = array<i64: 16, 128>}, {transform_indices = @transform_1, window_bounds = array<i64: 128, 128>}, {pipeline_mode = #tpu.pipeline_mode<synchronous>, transform_indices = @transform_2, window_bounds = array<i64: 128, 128>}, {transform_indices = @transform_3, window_bounds = array<i64: 16, 128>}]} {
    %c0_i32 = arith.constant 0 : i32
    %0 = arith.cmpi eq, %arg1, %c0_i32 : i32
    %1 = arith.extui %0 : i1 to i32
    %c0_i32_0 = arith.constant 0 : i32
    %2 = arith.cmpi ne, %1, %c0_i32_0 : i32
    scf.if %2 {
      %cst_10 = arith.constant 0.000000e+00 : f32
      %12 = vector.broadcast %cst_10 : f32 to vector<16x128xf32>
      %c0_11 = arith.constant 0 : index
      %c0_12 = arith.constant 0 : index
      %13 = vector.load %arg6[%c0_11, %c0_12] : memref<16x128xf32, #tpu.memory_space<vmem>>, vector<16x128xf32>
      tpu.vector_store %arg6[%c0_11, %c0_12], %12 {strides = array<i32>} : memref<16x128xf32, #tpu.memory_space<vmem>>, vector<16x128xf32>,
    } else {
    }
    %c0 = arith.constant 0 : index
    %c0_1 = arith.constant 0 : index
    %3 = vector.load %arg6[%c0, %c0_1] : memref<16x128xf32, #tpu.memory_space<vmem>>, vector<16x128xf32>
    %c0_2 = arith.constant 0 : index
    %c0_3 = arith.constant 0 : index
    %4 = vector.load %arg2[%c0_2, %c0_3] : memref<16x128xbf16, #tpu.memory_space<vmem>>, vector<16x128xbf16>
    %c0_4 = arith.constant 0 : index
    %c0_5 = arith.constant 0 : index
    %5 = vector.load %arg3[%c0_4, %c0_5] : memref<128x128xbf16, #tpu.memory_space<vmem>>, vector<128x128xbf16>
    %cst = arith.constant dense<0.000000e+00> : vector<16x128xf32>
    %6 = tpu.matmul %4, %5, %cst {dimension_numbers = #tpu.dot_dimension_numbers<[1], [0], [0], [1], [0, 0, 1, 1], [], []>} : vector<16x128xbf16>, vector<128x128xbf16>, vector<16x128xf32> -> vector<16x128xf32>
    %7 = arith.addf %3, %6 : vector<16x128xf32>
    %c0_6 = arith.constant 0 : index
    %c0_7 = arith.constant 0 : index
    %8 = vector.load %arg6[%c0_6, %c0_7] : memref<16x128xf32, #tpu.memory_space<vmem>>, vector<16x128xf32>
    tpu.vector_store %arg6[%c0_6, %c0_7], %7 {strides = array<i32>} : memref<16x128xf32, #tpu.memory_space<vmem>>, vector<16x128xf32>,
    %c0_i32_8 = arith.constant 0 : i32
    %9 = arith.cmpi eq, %arg1, %c0_i32_8 : i32
    %10 = arith.extui %9 : i1 to i32
    %c0_i32_9 = arith.constant 0 : i32
    %11 = arith.cmpi ne, %10, %c0_i32_9 : i32
    scf.if %11 {
      %c0_10 = arith.constant 0 : index
      %c0_11 = arith.constant 0 : index
      %12 = vector.load %arg6[%c0_10, %c0_11] : memref<16x128xf32, #tpu.memory_space<vmem>>, vector<16x128xf32>
      %c0_12 = arith.constant 0 : index
      %c0_13 = arith.constant 0 : index
      %13 = vector.load %arg4[%c0_12, %c0_13] : memref<128x128xf32, #tpu.memory_space<vmem>>, vector<128x128xf32>
      %cst_14 = arith.constant dense<0.000000e+00> : vector<16x128xf32>
      %14 = tpu.matmul %12, %13, %cst_14 {dimension_numbers = #tpu.dot_dimension_numbers<[1], [0], [0], [1], [0, 0, 1, 1], [], []>} : vector<16x128xf32>, vector<128x128xf32>, vector<16x128xf32> -> vector<16x128xf32>
      %c0_15 = arith.constant 0 : index
      %c0_16 = arith.constant 0 : index
      %15 = vector.load %arg5[%c0_15, %c0_16] : memref<16x128xf32, #tpu.memory_space<vmem>>, vector<16x128xf32>
      tpu.vector_store %arg5[%c0_15, %c0_16], %14 {strides = array<i32>} : memref<16x128xf32, #tpu.memory_space<vmem>>, vector<16x128xf32>,
    } else {
    }
    return
  }
  func.func @transform_0(%arg0: i32, %arg1: i32) -> (i32, i32) {
    %c0_i32 = arith.constant 0 : i32
    return %arg0, %arg1 : i32, i32
  }
  func.func @transform_1(%arg0: i32, %arg1: i32) -> (i32, i32) {
    %c0_i32 = arith.constant 0 : i32
    %c0_i32_0 = arith.constant 0 : i32
    return %arg1, %c0_i32 : i32, i32
  }
  func.func @transform_2(%arg0: i32, %arg1: i32) -> (i32, i32) {
    %c0_i32 = arith.constant 0 : i32
    %c0_i32_0 = arith.constant 0 : i32
    %c0_i32_1 = arith.constant 0 : i32
    return %c0_i32, %c0_i32_0 : i32, i32
  }
  func.func @transform_3(%arg0: i32, %arg1: i32) -> (i32, i32) {
    %c0_i32 = arith.constant 0 : i32
    %c0_i32_0 = arith.constant 0 : i32
    return %arg0, %c0_i32 : i32, i32
  }
}

</mosaic_0001>

<llo_original>
// kernel: tpu_custom_call.1
$region0: #{tpu_custom_call.1}
  #allocation0 [shape = 'u32[]', space=smem, size = 0x4, offset = 0x4, fixed_abs, tag = 'smem constant byte address 0x4 - core index']
  #allocation1 [shape = 'u32[144,128]{1,0:T(1,128)}', space=vmem, size = 0x12000, scoped, tag = 'internal scratch']
  #allocation2 [shape = 'f32[16,128]{1,0:T(8,128)}', space=vmem, size = 0x2000, scoped, tag = 'scratch operand']
  %s0 = inlined_call_operand.hbm [shape: bf16[16,128], index: 0, kind: input, shape index: {}]
  %s1 = inlined_call_operand.hbm [shape: bf16[128,128], index: 1, kind: input, shape index: {}]
  %s2 = inlined_call_operand.hbm [shape: f32[128,128], index: 2, kind: input, shape index: {}]
  %s3 = inlined_call_operand.hbm [shape: f32[16,128], index: 3, kind: output, shape index: {}]
  %s4 = sld [smem:[#allocation0]]
  $region42: #{tpu_custom_call.1} parent=0
    _
  %s6 = ssub.s32 1, %s4
  %s7 = scalar_select 0, %s6, %s4
  $region1: #{tpu_custom_call.1} parent=0
    #allocation3 [shape = 'u8[4096]{0}', space=vmem, size = 0x1000, scoped, tag = 'input window, operand 0, single buffered']
    #allocation4 [shape = 's32[1]{0}', space=sflag, size = 0x4, scoped, tag = 'scoped memory for tpu_custom_call.1']
    #allocation5 [shape = 's32[1]{0}', space=sflag, size = 0x4, scoped, tag = 'scoped memory for tpu_custom_call.1']
    #allocation6 [shape = 'u8[32768]{0}', space=vmem, size = 0x8000, scoped, tag = 'input window, operand 1, single buffered']
    #allocation7 [shape = 's32[1]{0}', space=sflag, size = 0x4, scoped, tag = 'scoped memory for tpu_custom_call.1']
    #allocation8 [shape = 'u8[65536]{0}', space=vmem, size = 0x10000, scoped, tag = 'input window, operand 2, single buffered']
    #allocation9 [shape = 'u8[8192]{0}', space=vmem, size = 0x2000, scoped, tag = 'output window, operand 0, single buffered']
    %8 = vsyncpa [#allocation4], 0
    %9 = vsyncpa [#allocation7], 0
    %10 = vsyncpa [#allocation5], 0
    // Predicated region
    $region2: #{tpu_custom_call.1} parent=1 // pred_check
      _
    $region3: #{tpu_custom_call.1} parent=1 // pred_check_branch
      %12 = sbr.rel (0) target = $region5
    $region4: #{tpu_custom_call.1} parent=1 // pred_region
      %s14 = ssub.s32 128, 128
      %15 = vsyncadd [#allocation4], %s14
      %s16 = sshll.u32 [#allocation3], 4
      %s17 = int_to_ptr.vmem [resolvable:$true] %s16
      %22 = dma.hbm_to_vmem [thread:$0]  %s0, 128, %s17, [#allocation4], 64, 64, 4
    $region5: #{tpu_custom_call.1} parent=1 // pred_fallthru
      _
    // Predicated region
    $region6: #{tpu_custom_call.1} parent=1 // pred_check
      _
    $region7: #{tpu_custom_call.1} parent=1 // pred_check_branch
      %24 = sbr.rel (0) target = $region9
    $region8: #{tpu_custom_call.1} parent=1 // pred_region
      %s26 = ssub.s32 1024, 1024
      %27 = vsyncadd [#allocation7], %s26
      %s28 = sshll.u32 [#allocation6], 4
      %s29 = int_to_ptr.vmem [resolvable:$true] %s28
      %34 = dma.hbm_to_vmem [thread:$0]  %s1, 1024, %s29, [#allocation7], 64, 64, 4
    $region9: #{tpu_custom_call.1} parent=1 // pred_fallthru
      _
    // Predicated region
    $region10: #{tpu_custom_call.1} parent=1 // pred_check
      _
    $region11: #{tpu_custom_call.1} parent=1 // pred_check_branch
      %36 = sbr.rel (0) target = $region13
    $region12: #{tpu_custom_call.1} parent=1 // pred_region
      %s38 = ssub.s32 2048, 2048
      %39 = vsyncadd [#allocation7], %s38
      %s40 = sshll.u32 [#allocation8], 4
      %s41 = int_to_ptr.vmem [resolvable:$true] %s40
      %46 = dma.hbm_to_vmem [thread:$0]  %s2, 2048, %s41, [#allocation7], 128, 128, 8
    $region13: #{tpu_custom_call.1} parent=1 // pred_fallthru
      _
    // Predicated region
    $region14: #{tpu_custom_call.1} parent=1 // pred_check
      _
    $region15: #{tpu_custom_call.1} parent=1 // pred_check_branch
      %48 = sbr.rel (0) target = $region17
    $region16: #{tpu_custom_call.1} parent=1 // pred_region
      %49 = dma.done [#allocation4], 128
    $region17: #{tpu_custom_call.1} parent=1 // pred_fallthru
      _
    // Predicated region
    $region18: #{tpu_custom_call.1} parent=1 // pred_check
      _
    $region19: #{tpu_custom_call.1} parent=1 // pred_check_branch
      %51 = sbr.rel (0) target = $region21
    $region20: #{tpu_custom_call.1} parent=1 // pred_region
      %52 = dma.done [#allocation7], 1024
    $region21: #{tpu_custom_call.1} parent=1 // pred_fallthru
      _
    // Predicated region
    $region22: #{tpu_custom_call.1} parent=1 // pred_check
      _
    $region23: #{tpu_custom_call.1} parent=1 // pred_check_branch
      %54 = sbr.rel (0) target = $region25
    $region24: #{tpu_custom_call.1} parent=1 // pred_region
      %55 = dma.done [#allocation7], 2048
    $region25: #{tpu_custom_call.1} parent=1 // pred_fallthru
      _
    %p57 = scmp.eq.s32.totalorder 0, 0
    // Predicated region
    $region26: #{tpu_custom_call.1} parent=1 // pred_check
      %p58 = pneg %p57
    $region27: #{tpu_custom_call.1} parent=1 // pred_check_branch
      %60 = sbr.rel (%p58) target = $region29
    $region28: #{tpu_custom_call.1} parent=1 // pred_region
      %61 = vst [vmem:[#allocation2] sm:$0xff] 0.0
      %62 = vst [vmem:[#allocation2 + $0x8] sm:$0xff] 0.0
    $region29: #{tpu_custom_call.1} parent=1 // pred_fallthru
      _
    %v63 = vld [vmem:[#allocation2] sm:$0xff]
    %v64 = vld [vmem:[#allocation2 + $0x8] sm:$0xff]
    %v65 = vld [vmem:[#allocation3] sm:$0xf]
    %v66 = vld [vmem:[#allocation3 + $0x4] sm:$0xf]
    %v67 = vld [vmem:[#allocation6] sm:$0xf]
    %v68 = vld [vmem:[#allocation6 + $0x4] sm:$0xf]
    %v69 = vld [vmem:[#allocation6 + $0x8] sm:$0xf]
    %v70 = vld [vmem:[#allocation6 + $0xc] sm:$0xf]
    %v71 = vld [vmem:[#allocation6 + $0x10] sm:$0xf]
    %v72 = vld [vmem:[#allocation6 + $0x14] sm:$0xf]
    %v73 = vld [vmem:[#allocation6 + $0x18] sm:$0xf]
    %v74 = vld [vmem:[#allocation6 + $0x1c] sm:$0xf]
    %v75 = vld [vmem:[#allocation6 + $0x20] sm:$0xf]
    %v76 = vld [vmem:[#allocation6 + $0x24] sm:$0xf]
    %v77 = vld [vmem:[#allocation6 + $0x28] sm:$0xf]
    %v78 = vld [vmem:[#allocation6 + $0x2c] sm:$0xf]
    %v79 = vld [vmem:[#allocation6 + $0x30] sm:$0xf]
    %v80 = vld [vmem:[#allocation6 + $0x34] sm:$0xf]
    %v81 = vld [vmem:[#allocation6 + $0x38] sm:$0xf]
    %v82 = vld [vmem:[#allocation6 + $0x3c] sm:$0xf]
    %v85 = vunpack.c.l.b16 %v65
    %v86 = vunpack.c.l.b16 %v66
    %v87 = vpack.c.b16 %v86, %v85
    %v105 = vunpack.c.l.b16 %v67
    %v106 = vunpack.c.l.b16 %v68
    %v107 = vunpack.c.l.b16 %v69
    %v108 = vunpack.c.l.b16 %v70
    %v109 = vunpack.c.l.b16 %v71
    %v110 = vunpack.c.l.b16 %v72
    %v111 = vunpack.c.l.b16 %v73
    %v112 = vunpack.c.l.b16 %v74
    %v113 = vunpack.c.l.b16 %v75
    %v114 = vunpack.c.l.b16 %v76
    %v115 = vunpack.c.l.b16 %v77
    %v116 = vunpack.c.l.b16 %v78
    %v117 = vunpack.c.l.b16 %v79
    %v118 = vunpack.c.l.b16 %v80
    %v119 = vunpack.c.l.b16 %v81
    %v120 = vunpack.c.l.b16 %v82
    %v121 = vpack.c.b16 %v106, %v105
    %v122 = vpack.c.b16 %v108, %v107
    %v123 = vpack.c.b16 %v110, %v109
    %v124 = vpack.c.b16 %v112, %v111
    %v125 = vpack.c.b16 %v114, %v113
    %v126 = vpack.c.b16 %v116, %v115
    %v127 = vpack.c.b16 %v118, %v117
    %v128 = vpack.c.b16 %v120, %v119
    %137 = vmatprep.subr.bf16.mxu0 0
    %138 = vmatpush1.bf16.msra.mxu0 %v121
    %139 = vmatprep.subr.bf16.mxu0 0
    %140 = vmatpush1.bf16.msra.mxu0 %v122
    %141 = vmatprep.subr.bf16.mxu0 0
    %142 = vmatpush1.bf16.msra.mxu0 %v123
    %143 = vmatprep.subr.bf16.mxu0 0
    %144 = vmatpush1.bf16.msra.mxu0 %v124
    %145 = vmatprep.subr.bf16.mxu0 0
    %146 = vmatpush1.bf16.msra.mxu0 %v125
    %147 = vmatprep.subr.bf16.mxu0 0
    %148 = vmatpush1.bf16.msra.mxu0 %v126
    %149 = vmatprep.subr.bf16.mxu0 0
    %150 = vmatpush1.bf16.msra.mxu0 %v127
    %151 = vmatprep.subr.bf16.mxu0 0
    %152 = vmatpush1.bf16.msra.mxu0 %v128
    %153 = vmatprep.subr.bf16.mxu0 0
    %154 = vmatpush1.bf16.msra.mxu0 0
    %155 = vmatprep.subr.bf16.mxu0 0
    %156 = vmatpush1.bf16.msra.mxu0 0
    %157 = vmatprep.subr.bf16.mxu0 0
    %158 = vmatpush1.bf16.msra.mxu0 0
    %159 = vmatprep.subr.bf16.mxu0 0
    %160 = vmatpush1.bf16.msra.mxu0 0
    %161 = vmatprep.subr.bf16.mxu0 0
    %162 = vmatpush1.bf16.msra.mxu0 0
    %163 = vmatprep.subr.bf16.mxu0 0
    %164 = vmatpush1.bf16.msra.mxu0 0
    %165 = vmatprep.subr.bf16.mxu0 0
    %166 = vmatpush1.bf16.msra.mxu0 0
    %167 = vmatprep.subr.bf16.mxu0 0
    %168 = vmatpush1.bf16.msra.mxu0 0
    %169 = vmatprep.mubr.bf16.mxu0 0
    %170 = vmatmul.mubr.bf16.gmra.mrb[0].mxu0 %v87
    %v171 = vpop.f32.mrb[0].mxu0
    %v172 = vadd.f32 0.0, %v171
    %v173 = vpop.f32.mrb[0].mxu0
    %v174 = vpop.f32.mrb[0].mxu0
    %v175 = vadd.f32 0.0, %v174
    %v176 = vpop.f32.mrb[0].mxu0
    %177 = vdwg.mxu0
    %v178 = vadd.f32 %v63, %v172
    %v179 = vadd.f32 %v64, %v175
    %180 = vst [vmem:[#allocation2] sm:$0xff] %v178
    %181 = vst [vmem:[#allocation2 + $0x8] sm:$0xff] %v179
    // Predicated region
    $region30: #{tpu_custom_call.1} parent=1 // pred_check
      %p182 = pneg %p57
    $region31: #{tpu_custom_call.1} parent=1 // pred_check_branch
      %184 = sbr.rel (%p182) target = $region33
    $region32: #{tpu_custom_call.1} parent=1 // pred_region
      %v185 = vld [vmem:[#allocation2] sm:$0xff]
      %v186 = vld [vmem:[#allocation2 + $0x8] sm:$0xff]
      %v187 = vld [vmem:[#allocation8] sm:$0xff]
      %v188 = vld [vmem:[#allocation8 + $0x8] sm:$0xff]
      %v189 = vld [vmem:[#allocation8 + $0x10] sm:$0xff]
      %v190 = vld [vmem:[#allocation8 + $0x18] sm:$0xff]
      %v191 = vld [vmem:[#allocation8 + $0x20] sm:$0xff]
      %v192 = vld [vmem:[#allocation8 + $0x28] sm:$0xff]
      %v193 = vld [vmem:[#allocation8 + $0x30] sm:$0xff]
      %v194 = vld [vmem:[#allocation8 + $0x38] sm:$0xff]
      %v195 = vld [vmem:[#allocation8 + $0x40] sm:$0xff]
      %v196 = vld [vmem:[#allocation8 + $0x48] sm:$0xff]
      %v197 = vld [vmem:[#allocation8 + $0x50] sm:$0xff]
      %v198 = vld [vmem:[#allocation8 + $0x58] sm:$0xff]
      %v199 = vld [vmem:[#allocation8 + $0x60] sm:$0xff]
      %v200 = vld [vmem:[#allocation8 + $0x68] sm:$0xff]
      %v201 = vld [vmem:[#allocation8 + $0x70] sm:$0xff]
      %v202 = vld [vmem:[#allocation8 + $0x78] sm:$0xff]
      %203 = vmatprep.subr.mxu0 0.0
      %204 = vmatpush1.msra.mxu0 %v187
      %205 = vmatprep.subr.mxu0 0.0
      %206 = vmatpush1.msra.mxu0 %v188
      %207 = vmatprep.subr.mxu0 0.0
      %208 = vmatpush1.msra.mxu0 %v189
      %209 = vmatprep.subr.mxu0 0.0
      %210 = vmatpush1.msra.mxu0 %v190
      %211 = vmatprep.subr.mxu0 0.0
      %212 = vmatpush1.msra.mxu0 %v191
      %213 = vmatprep.subr.mxu0 0.0
      %214 = vmatpush1.msra.mxu0 %v192
      %215 = vmatprep.subr.mxu0 0.0
      %216 = vmatpush1.msra.mxu0 %v193
      %217 = vmatprep.subr.mxu0 0.0
      %218 = vmatpush1.msra.mxu0 %v194
      %219 = vmatprep.subr.mxu0 0.0
      %220 = vmatpush1.msra.mxu0 %v195
      %221 = vmatprep.subr.mxu0 0.0
      %222 = vmatpush1.msra.mxu0 %v196
      %223 = vmatprep.subr.mxu0 0.0
      %224 = vmatpush1.msra.mxu0 %v197
      %225 = vmatprep.subr.mxu0 0.0
      %226 = vmatpush1.msra.mxu0 %v198
      %227 = vmatprep.subr.mxu0 0.0
      %228 = vmatpush1.msra.mxu0 %v199
      %229 = vmatprep.subr.mxu0 0.0
      %230 = vmatpush1.msra.mxu0 %v200
      %231 = vmatprep.subr.mxu0 0.0
      %232 = vmatpush1.msra.mxu0 %v201
      %233 = vmatprep.subr.mxu0 0.0
      %234 = vmatpush1.msra.mxu0 %v202
      %235 = vmatprep.subr.mxu0 0.0
      %236 = vmatpush1.msra.mxu0 0.0
      %237 = vmatprep.subr.mxu0 0.0
      %238 = vmatpush1.msra.mxu0 0.0
      %239 = vmatprep.subr.mxu0 0.0
      %240 = vmatpush1.msra.mxu0 0.0
      %241 = vmatprep.subr.mxu0 0.0
      %242 = vmatpush1.msra.mxu0 0.0
      %243 = vmatprep.subr.mxu0 0.0
      %244 = vmatpush1.msra.mxu0 0.0
      %245 = vmatprep.subr.mxu0 0.0
      %246 = vmatpush1.msra.mxu0 0.0
      %247 = vmatprep.subr.mxu0 0.0
      %248 = vmatpush1.msra.mxu0 0.0
      %249 = vmatprep.subr.mxu0 0.0
      %250 = vmatpush1.msra.mxu0 0.0
      %251 = vmatprep.subr.mxu0 0.0
      %252 = vmatpush1.msra.mxu0 0.0
      %253 = vmatprep.subr.mxu0 0.0
      %254 = vmatpush1.msra.mxu0 0.0
      %255 = vmatprep.subr.mxu0 0.0
      %256 = vmatpush1.msra.mxu0 0.0
      %257 = vmatprep.subr.mxu0 0.0
      %258 = vmatpush1.msra.mxu0 0.0
      %259 = vmatprep.subr.mxu0 0.0
      %260 = vmatpush1.msra.mxu0 0.0
      %261 = vmatprep.subr.mxu0 0.0
      %262 = vmatpush1.msra.mxu0 0.0
      %263 = vmatprep.subr.mxu0 0.0
      %264 = vmatpush1.msra.mxu0 0.0
      %265 = vmatprep.subr.mxu0 0.0
      %266 = vmatpush1.msra.mxu0 0.0
      %267 = vmatprep.mubr.f32.mxu0 0.0
      %268 = vmatmul.mubr.f32.gmra.mrb[0].mxu0 %v185
      %v269 = vpop.f32.mrb[0].mxu0
      %v270 = vadd.f32 0.0, %v269
      %v271 = vpop.f32.mrb[0].mxu0
      %272 = vmatprep.mubr.f32.mxu0 0.0
      %273 = vmatmul.mubr.f32.gmra.mrb[0].mxu0 %v186
      %v274 = vpop.f32.mrb[0].mxu0
      %v275 = vadd.f32 0.0, %v274
      %v276 = vpop.f32.mrb[0].mxu0
      %277 = vdwg.mxu0
      %278 = vst [vmem:[#allocation9] sm:$0xff] %v270
      %279 = vst [vmem:[#allocation9 + $0x8] sm:$0xff] %v275
    $region33: #{tpu_custom_call.1} parent=1 // pred_fallthru
      _
    // Predicated region
    $region34: #{tpu_custom_call.1} parent=1 // pred_check
      _
    $region35: #{tpu_custom_call.1} parent=1 // pred_check_branch
      %281 = sbr.rel (0) target = $region37
    $region36: #{tpu_custom_call.1} parent=1 // pred_region
      %s283 = ssub.s32 256, 256
      %284 = vsyncadd [#allocation5], %s283
      %s285 = sshll.u32 [#allocation9], 4
      %s286 = int_to_ptr.vmem [resolvable:$true] %s285
      %291 = dma.vmem_to_hbm [thread:$0]  %s286, 256, %s3, [#allocation5], 128, 128, 8
    $region37: #{tpu_custom_call.1} parent=1 // pred_fallthru
      _
    // Predicated region
    $region38: #{tpu_custom_call.1} parent=1 // pred_check
      _
    $region39: #{tpu_custom_call.1} parent=1 // pred_check_branch
      %293 = sbr.rel (0) target = $region41
    $region40: #{tpu_custom_call.1} parent=1 // pred_region
      %294 = dma.done [#allocation5], 256
    $region41: #{tpu_custom_call.1} parent=1 // pred_fallthru
      _
    %295 = vsyncpa [#allocation4], 1
    %296 = vsyncpa [#allocation7], 1
    %297 = vsyncpa [#allocation5], 1

</llo_original>
